<compile_context>
chip_gen: v5e
topology: v5e:2x2
jax: 0.10.0
libtpu: 0.0.40
codegen_flags: <defaults>
</compile_context>

<pallas_src>
import functools

import jax
import jax.numpy as jnp
from jax import lax
from jax.experimental import pallas as pl
from jax.experimental.pallas import tpu as pltpu


def _cdiv(a, b):
    return -(-a // b)


def _round_up(x, m):
    return _cdiv(x, m) * m


def _num_tensorcores():
    """Best-effort TensorCores-per-chip query (2 on v7x, 1 on v5e/v6e)."""
    try:
        kind = jax.devices()[0].device_kind.lower()
    except Exception:
        return 1
    return 2 if ("v7" in kind or "7x" in kind) else 1


def _choose_tile_m(m_rows, k_pad, oc_pad, in_itemsize, out_itemsize,
                   row_quantum, num_tc, vmem_budget=20 * 1024 * 1024):
    """Pick the row-tile size.

    Big tiles amortize the ~600-cycle per-grid-step overhead; we shrink until
    the double-buffered LHS/output tiles plus the (also double-buffered)
    resident weights/bias fit a conservative VMEM budget that leaves headroom
    on v7x's 64 MiB part.  The small-problem split is only applied on 2-TC
    chips (v7x) so each core gets >=2 steps; on 1-TC chips it would only add
    per-step overhead.
    """
    def vmem_need(tm):
        return (2 * tm * k_pad * in_itemsize          # LHS tile, double-buffered
                + 2 * tm * oc_pad * out_itemsize      # output tile, double-buffered
                + 2 * k_pad * oc_pad * in_itemsize    # resident weights (2 buffers)
                + 2 * oc_pad * 4)                     # bias (2 buffers)

    tm = 2048
    while tm > row_quantum and vmem_need(tm) > vmem_budget:
        tm //= 2
    tm = max(row_quantum, _round_up(tm, row_quantum))

    if m_rows <= tm:
        if num_tc >= 2 and m_rows > 4 * row_quantum:
            # Give each TensorCore >= 2 steps to amortize pipeline prologue.
            tm = _round_up(_cdiv(m_rows, 2 * num_tc), row_quantum)
        else:
            tm = _round_up(max(m_rows, row_quantum), row_quantum)
    return tm


def _conv_mm_kernel(x_ref, w_ref, b_ref, o_ref):
    """One grid step: (TM, K_pad) x (K_pad, OC_pad) matmul + bias + ReLU.

    x_ref: (TM, K_pad)      im2col patch rows (K_pad = full array dim)
    w_ref: (K_pad, OC_pad)  fused 3x3 conv weights (resident across steps)
    b_ref: (1, OC_pad)      bias (f32, resident)
    o_ref: (TM, OC_pad)     lane-dense output tile (unmasked stores)
    """
    acc = jnp.dot(x_ref[...], w_ref[...], preferred_element_type=jnp.float32)
    acc = acc + b_ref[...]
    o_ref[...] = jnp.maximum(acc, 0.0).astype(o_ref.dtype)


@functools.partial(
    jax.jit, static_argnames=("mxu_dtype", "out_dtype", "channels_last"))
def downsampler_forward(x_nchw, weight_oihw, bias, *,
                        mxu_dtype=jnp.bfloat16, out_dtype=None,
                        channels_last=False):
    """Forward matching nn.Conv2d(in_c, out_c, 3, stride=2, padding=1) + ReLU.

    x_nchw:      (B, C, H, W)
    weight_oihw: (OC, C, 3, 3)  (PyTorch OIHW layout)
    bias:        (OC,)
    mxu_dtype:   MXU operand dtype (bf16 default; accumulate is always f32)
    out_dtype:   output dtype (default: x dtype)
    channels_last: if True, return (B, Ho, Wo, OC) and skip the NCHW transpose.
    """
    B, C, H, W = x_nchw.shape
    OC = weight_oihw.shape[0]
    Ho = (H + 2 - 3) // 2 + 1
    Wo = (W + 2 - 3) // 2 + 1
    out_dtype = x_nchw.dtype if out_dtype is None else out_dtype

    # Cast BEFORE the im2col so all intermediates (and the dominant HBM
    # stream feeding the kernel) are already in the narrow MXU dtype.
    x = x_nchw.astype(mxu_dtype)
    w = weight_oihw.astype(mxu_dtype)

    # ---- im2col producer (allowed to fuse into the pallas input stream) ----
    x_nhwc = jnp.transpose(x, (0, 2, 3, 1))
    x_pad = jnp.pad(x_nhwc, ((0, 0), (1, 1), (1, 1), (0, 0)))  # (B, H+2, W+2, C)
    taps = []
    for kh in range(3):
        for kw in range(3):
            taps.append(
                lax.slice(
                    x_pad,
                    (0, kh, kw, 0),
                    (B, kh + 2 * (Ho - 1) + 1, kw + 2 * (Wo - 1) + 1, C),
                    (1, 2, 2, 1),
                )
            )  # each (B, Ho, Wo, C)
    # rows ordered (kh, kw, c), matching the weight reshape below.
    patches = jnp.stack(taps, axis=3).reshape(B * Ho * Wo, 9 * C)
    w_mat = jnp.transpose(w, (2, 3, 1, 0)).reshape(9 * C, OC)

    # ---- padding: K only to the sublane quantum, OC to a lane multiple -----
    M = B * Ho * Wo
    K = 9 * C
    in_itemsize = jnp.dtype(mxu_dtype).itemsize
    out_itemsize = jnp.dtype(out_dtype).itemsize
    row_quantum = 16 if (in_itemsize < 4 or out_itemsize < 4) else 8
    K_pad = _round_up(K, row_quantum)    # NOT 128: block dim == full array dim
    OC_pad = _round_up(OC, 128)          # lane-dense (unmasked) output stores

    num_tc = _num_tensorcores()
    TM = _choose_tile_m(M, K_pad, OC_pad, in_itemsize, max(out_itemsize, 4),
                        row_quantum, num_tc)
    M_pad = _round_up(M, TM)

    patches = jnp.pad(patches, ((0, M_pad - M), (0, K_pad - K)))
    w_mat = jnp.pad(w_mat, ((0, K_pad - K), (0, OC_pad - OC)))
    b_mat = jnp.pad(bias.astype(jnp.float32), (0, OC_pad - OC)).reshape(1, OC_pad)

    cost = pl.CostEstimate(
        flops=2 * M_pad * K_pad * OC_pad,
        transcendentals=0,
        bytes_accessed=(M_pad * K_pad * in_itemsize
                        + K_pad * OC_pad * in_itemsize
                        + OC_pad * 4
                        + M_pad * OC_pad * out_itemsize),
    )

    out = pl.pallas_call(
        _conv_mm_kernel,
        out_shape=jax.ShapeDtypeStruct((M_pad, OC_pad), out_dtype),
        grid_spec=pltpu.PrefetchScalarGridSpec(
            num_scalar_prefetch=0,
            grid=(M_pad // TM,),
            in_specs=[
                pl.BlockSpec((TM, K_pad), lambda i: (i, 0)),
                pl.BlockSpec((K_pad, OC_pad), lambda i: (0, 0)),  # resident
                pl.BlockSpec((1, OC_pad), lambda i: (0, 0)),      # resident
            ],
            out_specs=pl.BlockSpec((TM, OC_pad), lambda i: (i, 0)),
        ),
        compiler_params=pltpu.CompilerParams(
            dimension_semantics=("parallel",),
            # Let XLA fuse the im2col producer into the patches operand so it
            # is not materialized in HBM and read back (weights/bias excluded).
            allow_input_fusion=[True, False, False],
            vmem_limit_bytes=32 * 1024 * 1024,
        ),
        cost_estimate=cost,
    )(patches, w_mat, b_mat)

    out = out[:M, :OC].reshape(B, Ho, Wo, OC)
    if channels_last:
        return out
    return jnp.transpose(out, (0, 3, 1, 2))


def _reference_forward(x_nchw, weight_oihw, bias):
    """Pure-JAX reference (lax conv) for correctness checking."""
    y = lax.conv_general_dilated(
        x_nchw,
        weight_oihw,
        window_strides=(2, 2),
        padding=((1, 1), (1, 1)),
        dimension_numbers=("NCHW", "OIHW", "NCHW"),
    )
    y = y + bias[None, :, None, None]
    return jnp.maximum(y, 0.0)


if __name__ == "__main__":
    key = jax.random.PRNGKey(0)
    k_x, k_w, k_b = jax.random.split(key, 3)

    B, in_c, out_c, H, W = 2, 4, 8, 16, 16

    x = jax.random.normal(k_x, (B, in_c, H, W), dtype=jnp.float32)

    # Deterministic parameter init (mimics PyTorch's default uniform bound).
    fan_in = in_c * 3 * 3
    bound = 1.0 / jnp.sqrt(fan_in)
    weight = jax.random.uniform(
        k_w, (out_c, in_c, 3, 3), minval=-bound, maxval=bound, dtype=jnp.float32
    )
    bias = jax.random.uniform(
        k_b, (out_c,), minval=-bound, maxval=bound, dtype=jnp.float32
    )

    ref = _reference_forward(x, weight, bias)

    # f32 MXU-operand path: strict tolerance.
    out_f32 = jax.block_until_ready(
        downsampler_forward(x, weight, bias, mxu_dtype=jnp.float32))
    assert out_f32.shape == (B, out_c, H // 2, W // 2), out_f32.shape
    assert jnp.allclose(out_f32, ref, atol=1e-5, rtol=1e-5), "f32 path mismatch"

    # Default path: bf16 MXU operands (native on v5e/v6e/v7x), f32 accumulate.
    out_def = jax.block_until_ready(downsampler_forward(x, weight, bias))
    assert out_def.shape == (B, out_c, H // 2, W // 2), out_def.shape
    assert out_def.dtype == x.dtype
    assert jnp.allclose(out_def, ref, atol=2e-2, rtol=2e-2), "bf16 path mismatch"

    # Cheap-epilogue path: NHWC layout + bf16 output (skips the final transpose
    # and halves the output store stream) for consumers that accept it.
    out_nhwc = jax.block_until_ready(
        downsampler_forward(x, weight, bias,
                            channels_last=True, out_dtype=jnp.bfloat16))
    assert out_nhwc.shape == (B, H // 2, W // 2, out_c), out_nhwc.shape
    assert jnp.allclose(out_nhwc.astype(jnp.float32),
                        jnp.transpose(ref, (0, 2, 3, 1)),
                        atol=3e-2, rtol=3e-2), "NHWC/bf16 path mismatch"

    print("KERNEL_OK")
</pallas_src>

<mosaic_0001>
module attributes {stable_mosaic.version = 11 : i64} {
  func.func @_conv_mm_kernel(%arg0: i32, %arg1: memref<128x40xf32, #tpu.memory_space<vmem>>, %arg2: memref<40x128xf32, #tpu.memory_space<vmem>>, %arg3: memref<1x128xf32, #tpu.memory_space<vmem>>, %arg4: memref<128x128xf32, #tpu.memory_space<vmem>>) attributes {dimension_semantics = [#tpu.dimension_semantics<parallel>], iteration_bounds = array<i64: 1>, scalar_prefetch = 0 : i64, scratch_operands = 0 : i64, tpu.core_type = #tpu.core_type<tc>, window_params = [{transform_indices = @transform_0, window_bounds = array<i64: 128, 40>}, {pipeline_mode = #tpu.pipeline_mode<synchronous>, transform_indices = @transform_1, window_bounds = array<i64: 40, 128>}, {pipeline_mode = #tpu.pipeline_mode<synchronous>, transform_indices = @transform_2, window_bounds = array<i64: 1, 128>}, {transform_indices = @transform_3, window_bounds = array<i64: 128, 128>}]} {
    %c0 = arith.constant 0 : index
    %c0_0 = arith.constant 0 : index
    %0 = vector.load %arg1[%c0, %c0_0] : memref<128x40xf32, #tpu.memory_space<vmem>>, vector<128x40xf32>
    %c0_1 = arith.constant 0 : index
    %c0_2 = arith.constant 0 : index
    %1 = vector.load %arg2[%c0_1, %c0_2] : memref<40x128xf32, #tpu.memory_space<vmem>>, vector<40x128xf32>
    %cst = arith.constant dense<0.000000e+00> : vector<128x128xf32>
    %2 = tpu.matmul %0, %1, %cst {dimension_numbers = #tpu.dot_dimension_numbers<[1], [0], [0], [1], [0, 0, 1, 1], [], []>} : vector<128x40xf32>, vector<40x128xf32>, vector<128x128xf32> -> vector<128x128xf32>
    %c0_3 = arith.constant 0 : index
    %c0_4 = arith.constant 0 : index
    %3 = vector.load %arg3[%c0_3, %c0_4] : memref<1x128xf32, #tpu.memory_space<vmem>>, vector<1x128xf32>
    %4 = vector.broadcast %3 : vector<1x128xf32> to vector<128x128xf32>
    %5 = arith.addf %2, %4 : vector<128x128xf32>
    %cst_5 = arith.constant 0.000000e+00 : f32
    %6 = vector.broadcast %cst_5 : f32 to vector<128x128xf32>
    %7 = arith.maximumf %5, %6 : vector<128x128xf32>
    %c0_6 = arith.constant 0 : index
    %c0_7 = arith.constant 0 : index
    %8 = vector.load %arg4[%c0_6, %c0_7] : memref<128x128xf32, #tpu.memory_space<vmem>>, vector<128x128xf32>
    tpu.vector_store %arg4[%c0_6, %c0_7], %7 {strides = array<i32>} : memref<128x128xf32, #tpu.memory_space<vmem>>, vector<128x128xf32>,
    return
  }
  func.func @transform_0(%arg0: i32) -> (i32, i32) {
    %c0_i32 = arith.constant 0 : i32
    %c0_i32_0 = arith.constant 0 : i32
    return %arg0, %c0_i32 : i32, i32
  }
  func.func @transform_1(%arg0: i32) -> (i32, i32) {
    %c0_i32 = arith.constant 0 : i32
    %c0_i32_0 = arith.constant 0 : i32
    %c0_i32_1 = arith.constant 0 : i32
    return %c0_i32, %c0_i32_0 : i32, i32
  }
  func.func @transform_2(%arg0: i32) -> (i32, i32) {
    %c0_i32 = arith.constant 0 : i32
    %c0_i32_0 = arith.constant 0 : i32
    %c0_i32_1 = arith.constant 0 : i32
    return %c0_i32, %c0_i32_0 : i32, i32
  }
  func.func @transform_3(%arg0: i32) -> (i32, i32) {
    %c0_i32 = arith.constant 0 : i32
    %c0_i32_0 = arith.constant 0 : i32
    return %arg0, %c0_i32 : i32, i32
  }
}

</mosaic_0001>

<llo_original>
// kernel: downsampler_forward.2
$region0: #{downsampler_forward.2}
  #allocation0 [shape = 'u32[]', space=smem, size = 0x4, offset = 0x4, fixed_abs, tag = 'smem constant byte address 0x4 - core index']
  #allocation1 [shape = 'u32[72,128]{1,0:T(1,128)}', space=vmem, size = 0x9000, scoped, tag = 'internal scratch']
  #allocation2 [shape = 'u32[2048]{0}', space=vmem, size = 0x2000, scoped, tag = 'scoped memory for downsampler_forward.2']
  #allocation3 [shape = 'u32[2048]{0}', space=vmem, size = 0x2000, scoped, tag = 'scoped memory for downsampler_forward.2']
  #allocation4 [shape = 'u32[2048]{0}', space=vmem, size = 0x2000, scoped, tag = 'scoped memory for downsampler_forward.2']
  #allocation5 [shape = 'u32[2048]{0}', space=vmem, size = 0x2000, scoped, tag = 'scoped memory for downsampler_forward.2']
  #allocation6 [shape = 'u32[2048]{0}', space=vmem, size = 0x2000, scoped, tag = 'scoped memory for downsampler_forward.2']
  %s0 = inlined_call_operand.vmem [shape: f32[40,128], index: 0, kind: input, shape index: {}]
  %s1 = inlined_call_operand.vmem [shape: f32[1,128], index: 1, kind: input, shape index: {}]
  %s2 = inlined_call_operand.vmem [shape: f32[128,36], index: 2, kind: input, shape index: {}]
  %s3 = inlined_call_operand.<no memory space> [shape: f32[], index: 3, kind: input, shape index: {}]
  %s4 = inlined_call_operand.vmem [shape: f32[128,128], index: 4, kind: output, shape index: {}]
  %s5 = sld [smem:[#allocation0]]
  $region22: #{downsampler_forward.2} parent=0
    _
  %s7 = ssub.s32 1, %s5
  %s8 = scalar_select 0, %s7, %s5
  %v9 = vstv %s3
  $region1: #{downsampler_forward.2} parent=0
    #allocation7 [shape = 'u8[65536]{0}', space=vmem, size = 0x10000, dematerialized = true, scoped, tag = 'FusionAdapter Buffer %fusion.1 = f32[128,40]{1,0:T(8,128)} fusion(%param_2.1, %param_3), kind=kLoop, calls=%fused_computation.1.clone, metadata={op_name="jit(downsampler_forward)/jit(_pad)/pad" stack_frame_id=12}']
    // Predicated region
    $region2: #{downsampler_forward.2} parent=1 // pred_check
      _
    $region3: #{downsampler_forward.2} parent=1 // pred_check_branch
      %11 = sbr.rel (0) target = $region5
    $region4: #{downsampler_forward.2} parent=1 // pred_region
      _
    $region5: #{downsampler_forward.2} parent=1 // pred_fallthru
      _
    // Predicated region
    $region6: #{downsampler_forward.2} parent=1 // pred_check
      _
    $region7: #{downsampler_forward.2} parent=1 // pred_check_branch
      %13 = sbr.rel (0) target = $region9
    $region8: #{downsampler_forward.2} parent=1 // pred_region
      _
    $region9: #{downsampler_forward.2} parent=1 // pred_fallthru
      _
    // Predicated region
    $region10: #{downsampler_forward.2} parent=1 // pred_check
      _
    $region11: #{downsampler_forward.2} parent=1 // pred_check_branch
      %15 = sbr.rel (0) target = $region13
    $region12: #{downsampler_forward.2} parent=1 // pred_region
      _
    $region13: #{downsampler_forward.2} parent=1 // pred_fallthru
      _
    %v16 = vld [vmem:[%s2] sm:$0xff]
    %v17 = vlaneseq
    %v18 = vand.u32 %v17, 127
    %vm20 = vcmp.lt.s32.totalorder %v18, 36
    %v21 = vsel %vm20, %v16, %v9
    %s23 = ssub.s32 256, 1
    %24 = vst [vmem:[#allocation7] sm:%s23] %v21
    %s25 = scalar_lea.vmem %s2, 8
    %v26 = vld [vmem:[%s25] sm:$0xff]
    %v27 = vlaneseq
    %v28 = vand.u32 %v27, 127
    %vm30 = vcmp.lt.s32.totalorder %v28, 36
    %v31 = vsel %vm30, %v26, %v9
    %s32 = scalar_lea.vmem [#allocation7], 8
    %s34 = ssub.s32 256, 1
    %35 = vst [vmem:[%s32] sm:%s34] %v31
    %s36 = scalar_lea.vmem %s2, 16
    %v37 = vld [vmem:[%s36] sm:$0xff]
    %v38 = vlaneseq
    %v39 = vand.u32 %v38, 127
    %vm41 = vcmp.lt.s32.totalorder %v39, 36
    %v42 = vsel %vm41, %v37, %v9
    %s43 = scalar_lea.vmem [#allocation7], 16
    %s45 = ssub.s32 256, 1
    %46 = vst [vmem:[%s43] sm:%s45] %v42
    %s47 = scalar_lea.vmem %s2, 24
    %v48 = vld [vmem:[%s47] sm:$0xff]
    %v49 = vlaneseq
    %v50 = vand.u32 %v49, 127
    %vm52 = vcmp.lt.s32.totalorder %v50, 36
    %v53 = vsel %vm52, %v48, %v9
    %s54 = scalar_lea.vmem [#allocation7], 24
    %s56 = ssub.s32 256, 1
    %57 = vst [vmem:[%s54] sm:%s56] %v53
    %s58 = scalar_lea.vmem %s2, 32
    %v59 = vld [vmem:[%s58] sm:$0xff]
    %v60 = vlaneseq
    %v61 = vand.u32 %v60, 127
    %vm63 = vcmp.lt.s32.totalorder %v61, 36
    %v64 = vsel %vm63, %v59, %v9
    %s65 = scalar_lea.vmem [#allocation7], 32
    %s67 = ssub.s32 256, 1
    %68 = vst [vmem:[%s65] sm:%s67] %v64
    %s69 = scalar_lea.vmem %s2, 40
    %v70 = vld [vmem:[%s69] sm:$0xff]
    %v71 = vlaneseq
    %v72 = vand.u32 %v71, 127
    %vm74 = vcmp.lt.s32.totalorder %v72, 36
    %v75 = vsel %vm74, %v70, %v9
    %s76 = scalar_lea.vmem [#allocation7], 40
    %s78 = ssub.s32 256, 1
    %79 = vst [vmem:[%s76] sm:%s78] %v75
    %s80 = scalar_lea.vmem %s2, 48
    %v81 = vld [vmem:[%s80] sm:$0xff]
    %v82 = vlaneseq
    %v83 = vand.u32 %v82, 127
    %vm85 = vcmp.lt.s32.totalorder %v83, 36
    %v86 = vsel %vm85, %v81, %v9
    %s87 = scalar_lea.vmem [#allocation7], 48
    %s89 = ssub.s32 256, 1
    %90 = vst [vmem:[%s87] sm:%s89] %v86
    %s91 = scalar_lea.vmem %s2, 56
    %v92 = vld [vmem:[%s91] sm:$0xff]
    %v93 = vlaneseq
    %v94 = vand.u32 %v93, 127
    %vm96 = vcmp.lt.s32.totalorder %v94, 36
    %v97 = vsel %vm96, %v92, %v9
    %s98 = scalar_lea.vmem [#allocation7], 56
    %s100 = ssub.s32 256, 1
    %101 = vst [vmem:[%s98] sm:%s100] %v97
    %s102 = scalar_lea.vmem %s2, 64
    %v103 = vld [vmem:[%s102] sm:$0xff]
    %v104 = vlaneseq
    %v105 = vand.u32 %v104, 127
    %vm107 = vcmp.lt.s32.totalorder %v105, 36
    %v108 = vsel %vm107, %v103, %v9
    %s109 = scalar_lea.vmem [#allocation7], 64
    %s111 = ssub.s32 256, 1
    %112 = vst [vmem:[%s109] sm:%s111] %v108
    %s113 = scalar_lea.vmem %s2, 72
    %v114 = vld [vmem:[%s113] sm:$0xff]
    %v115 = vlaneseq
    %v116 = vand.u32 %v115, 127
    %vm118 = vcmp.lt.s32.totalorder %v116, 36
    %v119 = vsel %vm118, %v114, %v9
    %s120 = scalar_lea.vmem [#allocation7], 72
    %s122 = ssub.s32 256, 1
    %123 = vst [vmem:[%s120] sm:%s122] %v119
    %s124 = scalar_lea.vmem %s2, 80
    %v125 = vld [vmem:[%s124] sm:$0xff]
    %v126 = vlaneseq
    %v127 = vand.u32 %v126, 127
    %vm129 = vcmp.lt.s32.totalorder %v127, 36
    %v130 = vsel %vm129, %v125, %v9
    %s131 = scalar_lea.vmem [#allocation7], 80
    %s133 = ssub.s32 256, 1
    %134 = vst [vmem:[%s131] sm:%s133] %v130
    %s135 = scalar_lea.vmem %s2, 88
    %v136 = vld [vmem:[%s135] sm:$0xff]
    %v137 = vlaneseq
    %v138 = vand.u32 %v137, 127
    %vm140 = vcmp.lt.s32.totalorder %v138, 36
    %v141 = vsel %vm140, %v136, %v9
    %s142 = scalar_lea.vmem [#allocation7], 88
    %s144 = ssub.s32 256, 1
    %145 = vst [vmem:[%s142] sm:%s144] %v141
    %s146 = scalar_lea.vmem %s2, 96
    %v147 = vld [vmem:[%s146] sm:$0xff]
    %v148 = vlaneseq
    %v149 = vand.u32 %v148, 127
    %vm151 = vcmp.lt.s32.totalorder %v149, 36
    %v152 = vsel %vm151, %v147, %v9
    %s153 = scalar_lea.vmem [#allocation7], 96
    %s155 = ssub.s32 256, 1
    %156 = vst [vmem:[%s153] sm:%s155] %v152
    %s157 = scalar_lea.vmem %s2, 104
    %v158 = vld [vmem:[%s157] sm:$0xff]
    %v159 = vlaneseq
    %v160 = vand.u32 %v159, 127
    %vm162 = vcmp.lt.s32.totalorder %v160, 36
    %v163 = vsel %vm162, %v158, %v9
    %s164 = scalar_lea.vmem [#allocation7], 104
    %s166 = ssub.s32 256, 1
    %167 = vst [vmem:[%s164] sm:%s166] %v163
    %s168 = scalar_lea.vmem %s2, 112
    %v169 = vld [vmem:[%s168] sm:$0xff]
    %v170 = vlaneseq
    %v171 = vand.u32 %v170, 127
    %vm173 = vcmp.lt.s32.totalorder %v171, 36
    %v174 = vsel %vm173, %v169, %v9
    %s175 = scalar_lea.vmem [#allocation7], 112
    %s177 = ssub.s32 256, 1
    %178 = vst [vmem:[%s175] sm:%s177] %v174
    %s179 = scalar_lea.vmem %s2, 120
    %v180 = vld [vmem:[%s179] sm:$0xff]
    %v181 = vlaneseq
    %v182 = vand.u32 %v181, 127
    %vm184 = vcmp.lt.s32.totalorder %v182, 36
    %v185 = vsel %vm184, %v180, %v9
    %s186 = scalar_lea.vmem [#allocation7], 120
    %s188 = ssub.s32 256, 1
    %189 = vst [vmem:[%s186] sm:%s188] %v185
    %v190 = vld [vmem:[#allocation7] sm:$0xff]
    %v191 = vld [vmem:[#allocation7 + $0x8] sm:$0xff]
    %v192 = vld [vmem:[#allocation7 + $0x10] sm:$0xff]
    %v193 = vld [vmem:[#allocation7 + $0x18] sm:$0xff]
    %v194 = vld [vmem:[#allocation7 + $0x20] sm:$0xff]
    %v195 = vld [vmem:[#allocation7 + $0x28] sm:$0xff]
    %v196 = vld [vmem:[#allocation7 + $0x30] sm:$0xff]
    %v197 = vld [vmem:[#allocation7 + $0x38] sm:$0xff]
    %v198 = vld [vmem:[#allocation7 + $0x40] sm:$0xff]
    %v199 = vld [vmem:[#allocation7 + $0x48] sm:$0xff]
    %v200 = vld [vmem:[#allocation7 + $0x50] sm:$0xff]
    %v201 = vld [vmem:[#allocation7 + $0x58] sm:$0xff]
    %v202 = vld [vmem:[#allocation7 + $0x60] sm:$0xff]
    %v203 = vld [vmem:[#allocation7 + $0x68] sm:$0xff]
    %v204 = vld [vmem:[#allocation7 + $0x70] sm:$0xff]
    %v205 = vld [vmem:[#allocation7 + $0x78] sm:$0xff]
    %v206 = vld [vmem:[%s0] sm:$0xff]
    %v207 = vld [vmem:[%s0 + $0x8] sm:$0xff]
    %v208 = vld [vmem:[%s0 + $0x10] sm:$0xff]
    %v209 = vld [vmem:[%s0 + $0x18] sm:$0xff]
    %v210 = vld [vmem:[%s0 + $0x20] sm:$0xff]
    %v211 = vld [vmem:[%s1] sm:$0x1]
    %v213 = vperm.slane %v211, 0
    %vm215 = vcmask 326656
    %v217 = vsel %vm215, %v190, 0
    %v220 = vsel %vm215, %v191, 0
    %v223 = vsel %vm215, %v192, 0
    %v226 = vsel %vm215, %v193, 0
    %v229 = vsel %vm215, %v194, 0
    %v232 = vsel %vm215, %v195, 0
    %v235 = vsel %vm215, %v196, 0
    %v238 = vsel %vm215, %v197, 0
    %v241 = vsel %vm215, %v198, 0
    %v244 = vsel %vm215, %v199, 0
    %v247 = vsel %vm215, %v200, 0
    %v250 = vsel %vm215, %v201, 0
    %v253 = vsel %vm215, %v202, 0
    %v256 = vsel %vm215, %v203, 0
    %v259 = vsel %vm215, %v204, 0
    %v262 = vsel %vm215, %v205, 0
    %264 = vmatpush.msra.mxu0 0.0
    %265 = vmatpush.msra.mxu0 0.0
    %266 = vmatpush.msra.mxu0 0.0
    %267 = vmatpush.msra.mxu0 0.0
    %268 = vmatpush.msra.mxu0 0.0
    %269 = vmatpush.msra.mxu0 0.0
    %270 = vmatpush.msra.mxu0 0.0
    %271 = vmatpush.msra.mxu0 0.0
    %272 = vmatpush.msra.mxu0 0.0
    %273 = vmatpush.msra.mxu0 0.0
    %274 = vmatpush.msra.mxu0 0.0
    %275 = vmatpush.msra.mxu0 %v210
    %276 = vmatpush.msra.mxu0 %v209
    %277 = vmatpush.msra.mxu0 %v208
    %278 = vmatpush.msra.mxu0 %v207
    %279 = vmatpush.msra.mxu0 %v206
    %280 = vmatmul.f32.gmra.mxu0 %v217
    %v281 = vpop.f32.mrf.mxu0
    %v282 = vadd.f32 %v213, %v281
    %283 = vmatmul.f32.gmra.mxu0 %v220
    %v284 = vpop.f32.mrf.mxu0
    %v285 = vadd.f32 %v213, %v284
    %286 = vmatmul.f32.gmra.mxu0 %v223
    %v287 = vpop.f32.mrf.mxu0
    %v288 = vadd.f32 %v213, %v287
    %289 = vmatmul.f32.gmra.mxu0 %v226
    %v290 = vpop.f32.mrf.mxu0
    %v291 = vadd.f32 %v213, %v290
    %292 = vmatmul.f32.gmra.mxu0 %v229
    %v293 = vpop.f32.mrf.mxu0
    %v294 = vadd.f32 %v213, %v293
    %295 = vmatmul.f32.gmra.mxu0 %v232
    %v296 = vpop.f32.mrf.mxu0
    %v297 = vadd.f32 %v213, %v296
    %298 = vmatmul.f32.gmra.mxu0 %v235
    %v299 = vpop.f32.mrf.mxu0
    %v300 = vadd.f32 %v213, %v299
    %301 = vmatmul.f32.gmra.mxu0 %v238
    %v302 = vpop.f32.mrf.mxu0
    %v303 = vadd.f32 %v213, %v302
    %304 = vmatmul.f32.gmra.mxu0 %v241
    %v305 = vpop.f32.mrf.mxu0
    %v306 = vadd.f32 %v213, %v305
    %307 = vmatmul.f32.gmra.mxu0 %v244
    %v308 = vpop.f32.mrf.mxu0
    %v309 = vadd.f32 %v213, %v308
    %310 = vmatmul.f32.gmra.mxu0 %v247
    %v311 = vpop.f32.mrf.mxu0
    %v312 = vadd.f32 %v213, %v311
    %313 = vmatmul.f32.gmra.mxu0 %v250
    %v314 = vpop.f32.mrf.mxu0
    %v315 = vadd.f32 %v213, %v314
    %316 = vmatmul.f32.gmra.mxu0 %v253
    %v317 = vpop.f32.mrf.mxu0
    %v318 = vadd.f32 %v213, %v317
    %319 = vmatmul.f32.gmra.mxu0 %v256
    %v320 = vpop.f32.mrf.mxu0
    %v321 = vadd.f32 %v213, %v320
    %322 = vmatmul.f32.gmra.mxu0 %v259
    %v323 = vpop.f32.mrf.mxu0
    %v324 = vadd.f32 %v213, %v323
    %325 = vmatmul.f32.gmra.mxu0 %v262
    %v326 = vpop.f32.mrf.mxu0
    %v327 = vadd.f32 %v213, %v326
    %328 = vdwg.mxu0
    %v329 = vmax.f32 %v282, 0.0
    %v330 = vmax.f32 %v285, 0.0
    %v331 = vmax.f32 %v288, 0.0
    %v332 = vmax.f32 %v291, 0.0
    %v333 = vmax.f32 %v294, 0.0
    %v334 = vmax.f32 %v297, 0.0
    %v335 = vmax.f32 %v300, 0.0
    %v336 = vmax.f32 %v303, 0.0
    %v337 = vmax.f32 %v306, 0.0
    %v338 = vmax.f32 %v309, 0.0
    %v339 = vmax.f32 %v312, 0.0
    %v340 = vmax.f32 %v315, 0.0
    %v341 = vmax.f32 %v318, 0.0
    %v342 = vmax.f32 %v321, 0.0
    %v343 = vmax.f32 %v324, 0.0
    %v344 = vmax.f32 %v327, 0.0
    %345 = vst [vmem:[%s4] sm:$0xff] %v329
    %346 = vst [vmem:[%s4 + $0x8] sm:$0xff] %v330
    %347 = vst [vmem:[%s4 + $0x10] sm:$0xff] %v331
    %348 = vst [vmem:[%s4 + $0x18] sm:$0xff] %v332
    %349 = vst [vmem:[%s4 + $0x20] sm:$0xff] %v333
    %350 = vst [vmem:[%s4 + $0x28] sm:$0xff] %v334
    %351 = vst [vmem:[%s4 + $0x30] sm:$0xff] %v335
    %352 = vst [vmem:[%s4 + $0x38] sm:$0xff] %v336
    %353 = vst [vmem:[%s4 + $0x40] sm:$0xff] %v337
    %354 = vst [vmem:[%s4 + $0x48] sm:$0xff] %v338
    %355 = vst [vmem:[%s4 + $0x50] sm:$0xff] %v339
    %356 = vst [vmem:[%s4 + $0x58] sm:$0xff] %v340
    %357 = vst [vmem:[%s4 + $0x60] sm:$0xff] %v341
    %358 = vst [vmem:[%s4 + $0x68] sm:$0xff] %v342
    %359 = vst [vmem:[%s4 + $0x70] sm:$0xff] %v343
    %360 = vst [vmem:[%s4 + $0x78] sm:$0xff] %v344
    // Predicated region
    $region14: #{downsampler_forward.2} parent=1 // pred_check
      _
    $region15: #{downsampler_forward.2} parent=1 // pred_check_branch
      %362 = sbr.rel (0) target = $region17
    $region16: #{downsampler_forward.2} parent=1 // pred_region
      _
    $region17: #{downsampler_forward.2} parent=1 // pred_fallthru
      _
    // Predicated region
    $region18: #{downsampler_forward.2} parent=1 // pred_check
      _
    $region19: #{downsampler_forward.2} parent=1 // pred_check_branch
      %364 = sbr.rel (0) target = $region21
    $region20: #{downsampler_forward.2} parent=1 // pred_region
      _
    $region21: #{downsampler_forward.2} parent=1 // pred_fallthru
      _

</llo_original>
